<compile_context>
chip_gen: v7x
topology: tpu7x:2x2x1
jax: 0.10.0
libtpu: 0.0.40
codegen_flags: <defaults>
</compile_context>

<pallas_src>
import functools

import jax
import jax.numpy as jnp
from jax.experimental import pallas as pl
from jax.experimental.pallas import tpu as pltpu

LN_EPS = 1e-5  # nn.LayerNorm default


# ----------------------------------------------------------------------------
# helpers
# ----------------------------------------------------------------------------
def _const_spec(block_shape, index_map):
    """BlockSpec for grid-invariant operands: single-buffered when supported."""
    if hasattr(pl, "Buffered"):
        try:
            return pl.BlockSpec(block_shape, index_map,
                                pipeline_mode=pl.Buffered(1))
        except TypeError:
            pass
    return pl.BlockSpec(block_shape, index_map)


def _vmem_budget_and_limit():
    """Generation-aware (budget, vmem_limit_bytes)."""
    phys = None
    try:
        info = pltpu.get_tpu_info()
        phys = getattr(info, "vmem_capacity_bytes", None)
    except Exception:
        phys = None
    if not phys:
        phys = 64 * 1024 * 1024                      # conservative: v7x-sized
    if phys >= 100 * 1024 * 1024:                    # v5e / v6e (128 MiB)
        return 80 * 1024 * 1024, 100 * 1024 * 1024
    return 30 * 1024 * 1024, 44 * 1024 * 1024        # v7x (64 MiB)


def _largest_tile(n, cap):
    """Largest divisor of n that is <= cap and a multiple of 8 (or == n)."""
    cands = [t for t in range(min(n, cap), 0, -1)
             if n % t == 0 and (t % 8 == 0 or t == n)]
    return cands[0] if cands else n


def _attn_vmem_bytes(N, D, H, hd, tq, causal):
    """Rough per-step VMEM footprint of the attention kernel."""
    f32, bf16 = 4, 2
    b = 0
    b += 2 * N * hd * f32            # per-head q/k block (double-buffered)
    b += 2 * N * D * bf16            # v block (double-buffered)
    b += 2 * D * D * bf16            # W_out^T (worst case, 2 buffers)
    b += 4 * 2 * D * f32             # head-mix scale rows
    b += 2 * 2 * tq * D * f32        # out + outxa blocks (double-buffered)
    b += 2 * tq * N * f32            # qk block (double-buffered)
    b += 2 * tq * D * f32            # accumulator scratches
    temps = 6 if causal else 3       # live (tq,N)/(N,tq) f32 temporaries
    b += temps * tq * N * f32 + 3 * tq * D * f32
    return b


def _choose_tq(N, D, H, hd, budget, causal, cap=512):
    cands = [t for t in range(min(N, cap), 0, -1)
             if N % t == 0 and (t % 8 == 0 or t == N)]
    if not cands:
        return N
    for t in cands:
        if _attn_vmem_bytes(N, D, H, hd, t, causal) <= budget:
            return t
    return cands[-1]


# ----------------------------------------------------------------------------
# kernel 1: LayerNorm + kv projection (q emitted per-head, v emitted bf16)
# ----------------------------------------------------------------------------
def _ln_kv_kernel(x_ref, g_ref, b_ref, wq_ref, wv_ref, qh_ref, v_ref, *, head):
    """x block (1,TR,D) -> q_heads (1,H,TR,hd) f32, v (1,TR,D) bf16."""
    xb = x_ref[0]                                           # (TR, D)
    mean = jnp.mean(xb, axis=-1, keepdims=True)
    cen = xb - mean
    var = jnp.mean(cen * cen, axis=-1, keepdims=True)
    xn = cen * jax.lax.rsqrt(var + LN_EPS) * g_ref[0] + b_ref[0]

    v_ref[0] = jnp.dot(xn, wv_ref[...],
                       preferred_element_type=jnp.float32).astype(jnp.bfloat16)
    # Per-head q projection keeps the contraction dim D full for the MXU and
    # writes the (B,H,N,hd) layout the attention kernel consumes (no in-kernel
    # lane slicing anywhere downstream).
    for h in range(head):
        qh_ref[0, h] = jnp.dot(xn, wq_ref[h],
                               preferred_element_type=jnp.float32)


# ----------------------------------------------------------------------------
# kernel 2: attention (one batch / one query tile / one head per grid step)
# ----------------------------------------------------------------------------
def _attn_kernel(qh_ref, v_ref, wout_ref, sx_ref, sxa_ref,
                 out_ref, outxa_ref, qk_ref, xacc_ref, xaacc_ref,
                 *, tq, causal):
    """
    qh_ref:   (1, 1, N, hd) f32   q/k slab for head h (whole sequence)
    v_ref:    (1, N, D)     bf16  values (whole sequence, all heads)
    wout_ref: (D, D)        bf16  W_out^T
    sx_ref:   (1, 1, D)     f32   head-mix scale row for head h (x branch)
    sxa_ref:  (1, 1, D)     f32   head-mix scale row for head h (xa branch)
    outputs:  out (1,TQ,D) f32, outxa (1,TQ,D) f32, qk (1,1,TQ,N) f32
    scratch:  xacc/xaacc (TQ, D) f32 accumulators across the head axis
    """
    N = qh_ref.shape[2]
    qi = pl.program_id(1)
    h = pl.program_id(2)
    nh = pl.num_programs(2)

    @pl.when(h == 0)
    def _():
        xacc_ref[...] = jnp.zeros_like(xacc_ref)
        xaacc_ref[...] = jnp.zeros_like(xaacc_ref)

    q0 = qi * tq
    if tq % 8 == 0:
        q0 = pl.multiple_of(q0, 8)

    keys = qh_ref[0, 0]                                     # (N, hd)
    qtile = qh_ref[0, 0, pl.ds(q0, tq), :]                  # (TQ, hd)

    # scores (f32 so the returned qk stays within 2e-3 of the reference)
    s_raw = jax.lax.dot_general(qtile, keys, (((1,), (1,)), ((), ())),
                                preferred_element_type=jnp.float32)  # (TQ, N)

    neg = -jnp.finfo(jnp.float32).max
    if causal:
        row = q0 + jax.lax.broadcasted_iota(jnp.int32, (tq, N), 0)
        col = jax.lax.broadcasted_iota(jnp.int32, (tq, N), 1)
        s = jnp.where(col > row, neg, s_raw)
    else:
        s = s_raw
    qk_ref[0, 0] = s                                        # lane-dense slab

    # row softmax (dim=-1), EUP reciprocal instead of a (TQ,N) division
    m = jnp.max(s, axis=-1, keepdims=True)
    p = jnp.exp(s - m)
    a1 = p * pl.reciprocal(jnp.sum(p, axis=-1, keepdims=True), approx=True)

    vv = v_ref[0]                                           # (N, D) bf16
    c1 = jnp.dot(a1.astype(jnp.bfloat16), vv,
                 preferred_element_type=jnp.float32)        # (TQ, D)

    sx = sx_ref[0]                                          # (1, D)
    sxa = sxa_ref[0]                                        # (1, D)
    xacc_ref[...] += c1 * sx

    if causal:
        # Masked scores are not symmetric: column softmax over all queries.
        # s_col comes from an XLU transpose of the unmasked s (no extra MXU
        # matmul), then the column mask is applied.
        rowc = jax.lax.broadcasted_iota(jnp.int32, (N, tq), 0)          # j
        colc = q0 + jax.lax.broadcasted_iota(jnp.int32, (N, tq), 1)     # i
        s_col = jnp.where(colc > rowc, neg, jnp.transpose(s_raw))       # (N, TQ)
        mc = jnp.max(s_col, axis=0, keepdims=True)
        pc = jnp.exp(s_col - mc)
        a2 = pc * pl.reciprocal(jnp.sum(pc, axis=0, keepdims=True), approx=True)
        c2 = jax.lax.dot_general(a2.astype(jnp.bfloat16), vv,
                                 (((0,), (0,)), ((), ())),
                                 preferred_element_type=jnp.float32)    # (TQ, D)
        xaacc_ref[...] += c2 * sxa
    else:
        # q == k and no mask => softmax(s,-2).T == softmax(s,-1): reuse c1.
        xaacc_ref[...] += c1 * sxa

    @pl.when(h == nh - 1)
    def _():
        wo = wout_ref[...]                                  # (D, D) bf16
        out_ref[0] = jnp.dot(xacc_ref[...].astype(jnp.bfloat16), wo,
                             preferred_element_type=jnp.float32)
        outxa_ref[0] = jnp.dot(xaacc_ref[...].astype(jnp.bfloat16), wo,
                               preferred_element_type=jnp.float32)


# ----------------------------------------------------------------------------
# wrapper
# ----------------------------------------------------------------------------
def attentiond_forward(x, params, *, head, causal=False):
    B, N, D = x.shape
    assert D % head == 0
    hd = D // head

    gamma = params["ln_gamma"].reshape(1, D).astype(jnp.float32)
    beta = params["ln_beta"].reshape(1, D).astype(jnp.float32)
    w_kv = params["w_kv"].astype(jnp.float32)                     # (2D, D)
    # Per-head q-projection weights, pre-transposed: wq_heads[h] = W_q[h].T
    wq_heads = w_kv[:D].reshape(head, hd, D).transpose(0, 2, 1)   # (H, D, hd)
    wv_t = w_kv[D:].T                                             # (D, D) f32
    wout_t = params["w_out"].T.astype(jnp.bfloat16)               # (D, D) bf16
    # 1x1 conv over head channels == per-(out,in) scalar; expand into
    # lane-dense (H, 1, D) scale rows: scale[h, 0, o*hd + k] = W[o, h].
    scale_x = jnp.repeat(params["w_x"].T, hd, axis=1).astype(jnp.float32)
    scale_xa = jnp.repeat(params["w_xa"].T, hd, axis=1).astype(jnp.float32)
    scale_x = scale_x.reshape(head, 1, D)
    scale_xa = scale_xa.reshape(head, 1, D)

    budget, vmem_limit = _vmem_budget_and_limit()

    # ---- kernel 1: LayerNorm + kv projection ----
    tr = _largest_tile(N, 256)
    ln_kernel = functools.partial(_ln_kv_kernel, head=head)
    q_heads, v_bf16 = pl.pallas_call(
        ln_kernel,
        out_shape=(jax.ShapeDtypeStruct((B, head, N, hd), jnp.float32),
                   jax.ShapeDtypeStruct((B, N, D), jnp.bfloat16)),
        grid_spec=pltpu.PrefetchScalarGridSpec(
            num_scalar_prefetch=0,
            grid=(B, N // tr),
            in_specs=[
                pl.BlockSpec((1, tr, D), lambda b, r: (b, r, 0)),
                _const_spec((1, D), lambda b, r: (0, 0)),
                _const_spec((1, D), lambda b, r: (0, 0)),
                _const_spec((head, D, hd), lambda b, r: (0, 0, 0)),
                _const_spec((D, D), lambda b, r: (0, 0)),
            ],
            out_specs=(
                pl.BlockSpec((1, head, tr, hd), lambda b, r: (b, 0, r, 0)),
                pl.BlockSpec((1, tr, D), lambda b, r: (b, r, 0)),
            ),
        ),
        compiler_params=pltpu.CompilerParams(
            dimension_semantics=("parallel", "parallel"),
            vmem_limit_bytes=vmem_limit,
        ),
    )(x.astype(jnp.float32), gamma, beta, wq_heads, wv_t)

    # ---- kernel 2: attention ----
    tq = _choose_tq(N, D, head, hd, budget, causal)
    nq = N // tq
    attn_kernel = functools.partial(_attn_kernel, tq=tq, causal=causal)

    out_shapes = (
        jax.ShapeDtypeStruct((B, N, D), jnp.float32),          # out
        jax.ShapeDtypeStruct((B, N, D), jnp.float32),          # outxa
        jax.ShapeDtypeStruct((B, head, N, N), jnp.float32),    # qk scores
    )

    grid_spec = pltpu.PrefetchScalarGridSpec(
        num_scalar_prefetch=0,
        grid=(B, nq, head),
        in_specs=[
            pl.BlockSpec((1, 1, N, hd), lambda b, q, h: (b, h, 0, 0)),   # q/k head slab
            pl.BlockSpec((1, N, D), lambda b, q, h: (b, 0, 0)),          # v (bf16)
            _const_spec((D, D), lambda b, q, h: (0, 0)),                 # W_out^T
            pl.BlockSpec((1, 1, D), lambda b, q, h: (h, 0, 0)),          # scale row (x)
            pl.BlockSpec((1, 1, D), lambda b, q, h: (h, 0, 0)),          # scale row (xa)
        ],
        out_specs=(
            pl.BlockSpec((1, tq, D), lambda b, q, h: (b, q, 0)),
            pl.BlockSpec((1, tq, D), lambda b, q, h: (b, q, 0)),
            pl.BlockSpec((1, 1, tq, N), lambda b, q, h: (b, h, q, 0)),
        ),
        scratch_shapes=[pltpu.VMEM((tq, D), jnp.float32),
                        pltpu.VMEM((tq, D), jnp.float32)],
    )

    return pl.pallas_call(
        attn_kernel,
        out_shape=out_shapes,
        grid_spec=grid_spec,
        compiler_params=pltpu.CompilerParams(
            # Batch and query-tile axes are independent (LN+KV is hoisted), so
            # both can shard across TensorCores; the head axis carries the
            # output accumulator and must stay sequential.
            dimension_semantics=("parallel", "parallel", "arbitrary"),
            vmem_limit_bytes=vmem_limit,
        ),
    )(q_heads, v_bf16, wout_t, scale_x, scale_xa)


# ----------------------------------------------------------------------------
# pure-JAX reference (mirrors the PyTorch module, xa=None)
# ----------------------------------------------------------------------------
def reference_forward(x, params, *, head, causal=False):
    B, N, D = x.shape
    hd = D // head
    gamma, beta = params["ln_gamma"], params["ln_beta"]
    mean = x.mean(-1, keepdims=True)
    var = ((x - mean) ** 2).mean(-1, keepdims=True)
    xn = (x - mean) / jnp.sqrt(var + LN_EPS) * gamma + beta
    kv = xn @ params["w_kv"].T
    q, v = kv[..., :D], kv[..., D:]
    qh = q.reshape(B, N, head, hd).transpose(0, 2, 1, 3)
    vh = v.reshape(B, N, head, hd).transpose(0, 2, 1, 3)
    s = jnp.einsum("bhid,bhjd->bhij", qh, qh)
    if causal:
        row = jnp.arange(N)[:, None]
        col = jnp.arange(N)[None, :]
        s = jnp.where(col > row, -jnp.finfo(jnp.float32).max, s)
    a1 = jax.nn.softmax(s, axis=-1)
    a2 = jax.nn.softmax(s, axis=-2)
    m1 = jnp.einsum("oh,bhij->boij", params["w_x"], a1)
    m2 = jnp.einsum("oh,bhij->boij", params["w_xa"], a2)
    xo = jnp.einsum("bhij,bhjd->bhid", m1, vh)
    xao = jnp.einsum("bhji,bhjd->bhid", m2, vh)
    xo = xo.transpose(0, 2, 1, 3).reshape(B, N, D)
    xao = xao.transpose(0, 2, 1, 3).reshape(B, N, D)
    return xo @ params["w_out"].T, xao @ params["w_out"].T, s


if __name__ == "__main__":
    B, N, D, H = 2, 8, 32, 4   # batch, seq, dims, heads  (head_dim = 8)

    key = jax.random.PRNGKey(0)
    k_x, k_kv, k_out, k_cx, k_cxa, k_g, k_b = jax.random.split(key, 7)

    params = {
        "ln_gamma": 1.0 + 0.1 * jax.random.normal(k_g, (D,), jnp.float32),
        "ln_beta": 0.1 * jax.random.normal(k_b, (D,), jnp.float32),
        # nn.Linear(dims, dims*2, bias=False).weight -> (2D, D)
        "w_kv": jax.random.normal(k_kv, (2 * D, D), jnp.float32) / jnp.sqrt(D),
        # nn.Linear(dims, dims, bias=False).weight -> (D, D)
        "w_out": jax.random.normal(k_out, (D, D), jnp.float32) / jnp.sqrt(D),
        # nn.Conv2d(head, head, 1, bias=False).weight -> (H, H, 1, 1) squeezed
        "w_x": jax.random.normal(k_cx, (H, H), jnp.float32) / jnp.sqrt(H),
        "w_xa": jax.random.normal(k_cxa, (H, H), jnp.float32) / jnp.sqrt(H),
    }

    x = jax.random.normal(k_x, (B, N, D), jnp.float32)

    for causal in (False, True):
        out, outxa, qk = attentiond_forward(x, params, head=H, causal=causal)
        jax.block_until_ready((out, outxa, qk))
        r_out, r_outxa, r_qk = reference_forward(x, params, head=H, causal=causal)
        assert jnp.allclose(qk, r_qk, atol=2e-3, rtol=2e-3), f"qk mismatch (causal={causal})"
        assert jnp.allclose(out, r_out, atol=2e-2, rtol=2e-2), f"out mismatch (causal={causal})"
        assert jnp.allclose(outxa, r_outxa, atol=2e-2, rtol=2e-2), f"outxa mismatch (causal={causal})"

    print("KERNEL_OK")
</pallas_src>

<mosaic_0001>
module attributes {stable_mosaic.version = 11 : i64} {
  func.func @_ln_kv_kernel(%arg0: i32, %arg1: i32, %arg2: memref<1x8x32xf32, #tpu.memory_space<vmem>>, %arg3: memref<1x32xf32, #tpu.memory_space<vmem>>, %arg4: memref<1x32xf32, #tpu.memory_space<vmem>>, %arg5: memref<4x32x8xf32, #tpu.memory_space<vmem>>, %arg6: memref<32x32xf32, #tpu.memory_space<vmem>>, %arg7: memref<1x4x8x8xf32, #tpu.memory_space<vmem>>, %arg8: memref<1x8x32xbf16, #tpu.memory_space<vmem>>) attributes {dimension_semantics = [#tpu.dimension_semantics<parallel>, #tpu.dimension_semantics<parallel>], iteration_bounds = array<i64: 2, 1>, scalar_prefetch = 0 : i64, scratch_operands = 0 : i64, tpu.core_type = #tpu.core_type<tc>, window_params = [{transform_indices = @transform_0, window_bounds = array<i64: 1, 8, 32>}, {pipeline_mode = #tpu.pipeline_mode<synchronous>, transform_indices = @transform_1, window_bounds = array<i64: 1, 32>}, {pipeline_mode = #tpu.pipeline_mode<synchronous>, transform_indices = @transform_2, window_bounds = array<i64: 1, 32>}, {pipeline_mode = #tpu.pipeline_mode<synchronous>, transform_indices = @transform_3, window_bounds = array<i64: 4, 32, 8>}, {pipeline_mode = #tpu.pipeline_mode<synchronous>, transform_indices = @transform_4, window_bounds = array<i64: 32, 32>}, {transform_indices = @transform_5, window_bounds = array<i64: 1, 4, 8, 8>}, {transform_indices = @transform_6, window_bounds = array<i64: 1, 8, 32>}]} {
    %c0 = arith.constant 0 : index
    %c0_0 = arith.constant 0 : index
    %c0_1 = arith.constant 0 : index
    %0 = vector.load %arg2[%c0, %c0_0, %c0_1] : memref<1x8x32xf32, #tpu.memory_space<vmem>>, vector<1x8x32xf32>
    %1 = vector.shape_cast %0 : vector<1x8x32xf32> to vector<8x32xf32>
    %cst = arith.constant dense<0.000000e+00> : vector<8xf32>
    %2 = vector.multi_reduction <add>, %1, %cst [1] : vector<8x32xf32> to vector<8xf32>
    %3 = vector.shape_cast %2 : vector<8xf32> to vector<8x1xf32>
    %cst_2 = arith.constant 3.200000e+01 : f32
    %4 = vector.broadcast %cst_2 : f32 to vector<8x1xf32>
    %5 = arith.divf %3, %4 : vector<8x1xf32>
    %6 = vector.broadcast %5 : vector<8x1xf32> to vector<8x32xf32>
    %7 = arith.subf %1, %6 : vector<8x32xf32>
    %8 = arith.mulf %7, %7 : vector<8x32xf32>
    %cst_3 = arith.constant dense<0.000000e+00> : vector<8xf32>
    %9 = vector.multi_reduction <add>, %8, %cst_3 [1] : vector<8x32xf32> to vector<8xf32>
    %10 = vector.shape_cast %9 : vector<8xf32> to vector<8x1xf32>
    %cst_4 = arith.constant 3.200000e+01 : f32
    %11 = vector.broadcast %cst_4 : f32 to vector<8x1xf32>
    %12 = arith.divf %10, %11 : vector<8x1xf32>
    %cst_5 = arith.constant 9.99999974E-6 : f32
    %13 = vector.broadcast %cst_5 : f32 to vector<8x1xf32>
    %14 = arith.addf %12, %13 : vector<8x1xf32>
    %15 = math.rsqrt %14 : vector<8x1xf32>
    %16 = vector.broadcast %15 : vector<8x1xf32> to vector<8x32xf32>
    %17 = arith.mulf %7, %16 : vector<8x32xf32>
    %c0_6 = arith.constant 0 : index
    %c0_7 = arith.constant 0 : index
    %18 = vector.load %arg3[%c0_6, %c0_7] : memref<1x32xf32, #tpu.memory_space<vmem>>, vector<1x32xf32>
    %19 = vector.shape_cast %18 : vector<1x32xf32> to vector<32xf32>
    %20 = vector.shape_cast %19 : vector<32xf32> to vector<1x32xf32>
    %21 = vector.broadcast %20 : vector<1x32xf32> to vector<8x32xf32>
    %22 = arith.mulf %17, %21 : vector<8x32xf32>
    %c0_8 = arith.constant 0 : index
    %c0_9 = arith.constant 0 : index
    %23 = vector.load %arg4[%c0_8, %c0_9] : memref<1x32xf32, #tpu.memory_space<vmem>>, vector<1x32xf32>
    %24 = vector.shape_cast %23 : vector<1x32xf32> to vector<32xf32>
    %25 = vector.shape_cast %24 : vector<32xf32> to vector<1x32xf32>
    %26 = vector.broadcast %25 : vector<1x32xf32> to vector<8x32xf32>
    %27 = arith.addf %22, %26 : vector<8x32xf32>
    %c0_10 = arith.constant 0 : index
    %c0_11 = arith.constant 0 : index
    %28 = vector.load %arg6[%c0_10, %c0_11] : memref<32x32xf32, #tpu.memory_space<vmem>>, vector<32x32xf32>
    %cst_12 = arith.constant dense<0.000000e+00> : vector<8x32xf32>
    %29 = tpu.matmul %27, %28, %cst_12 {dimension_numbers = #tpu.dot_dimension_numbers<[1], [0], [0], [1], [0, 0, 1, 1], [], []>} : vector<8x32xf32>, vector<32x32xf32>, vector<8x32xf32> -> vector<8x32xf32>
    %30 = arith.truncf %29 : vector<8x32xf32> to vector<8x32xbf16>
    %c0_13 = arith.constant 0 : index
    %c0_14 = arith.constant 0 : index
    %c0_15 = arith.constant 0 : index
    %31 = vector.load %arg8[%c0_13, %c0_14, %c0_15] : memref<1x8x32xbf16, #tpu.memory_space<vmem>>, vector<1x8x32xbf16>
    %32 = vector.shape_cast %31 : vector<1x8x32xbf16> to vector<8x32xbf16>
    %33 = vector.shape_cast %30 : vector<8x32xbf16> to vector<1x8x32xbf16>
    tpu.vector_store %arg8[%c0_13, %c0_14, %c0_15], %33 {strides = array<i32>} : memref<1x8x32xbf16, #tpu.memory_space<vmem>>, vector<1x8x32xbf16>,
    %c0_16 = arith.constant 0 : index
    %c0_17 = arith.constant 0 : index
    %c0_18 = arith.constant 0 : index
    %34 = vector.load %arg5[%c0_16, %c0_17, %c0_18] : memref<4x32x8xf32, #tpu.memory_space<vmem>>, vector<1x32x8xf32>
    %35 = vector.shape_cast %34 : vector<1x32x8xf32> to vector<32x8xf32>
    %cst_19 = arith.constant dense<0.000000e+00> : vector<8x8xf32>
    %36 = tpu.matmul %27, %35, %cst_19 {dimension_numbers = #tpu.dot_dimension_numbers<[1], [0], [0], [1], [0, 0, 1, 1], [], []>} : vector<8x32xf32>, vector<32x8xf32>, vector<8x8xf32> -> vector<8x8xf32>
    %c0_20 = arith.constant 0 : index
    %c0_21 = arith.constant 0 : index
    %c0_22 = arith.constant 0 : index
    %c0_23 = arith.constant 0 : index
    %37 = vector.load %arg7[%c0_20, %c0_21, %c0_22, %c0_23] : memref<1x4x8x8xf32, #tpu.memory_space<vmem>>, vector<1x1x8x8xf32>
    %38 = vector.shape_cast %37 : vector<1x1x8x8xf32> to vector<8x8xf32>
    %39 = vector.shape_cast %36 : vector<8x8xf32> to vector<1x1x8x8xf32>
    tpu.vector_store %arg7[%c0_20, %c0_21, %c0_22, %c0_23], %39 {strides = array<i32>} : memref<1x4x8x8xf32, #tpu.memory_space<vmem>>, vector<1x1x8x8xf32>,
    %c1 = arith.constant 1 : index
    %c0_24 = arith.constant 0 : index
    %c0_25 = arith.constant 0 : index
    %40 = vector.load %arg5[%c1, %c0_24, %c0_25] : memref<4x32x8xf32, #tpu.memory_space<vmem>>, vector<1x32x8xf32>
    %41 = vector.shape_cast %40 : vector<1x32x8xf32> to vector<32x8xf32>
    %cst_26 = arith.constant dense<0.000000e+00> : vector<8x8xf32>
    %42 = tpu.matmul %27, %41, %cst_26 {dimension_numbers = #tpu.dot_dimension_numbers<[1], [0], [0], [1], [0, 0, 1, 1], [], []>} : vector<8x32xf32>, vector<32x8xf32>, vector<8x8xf32> -> vector<8x8xf32>
    %c0_27 = arith.constant 0 : index
    %c1_28 = arith.constant 1 : index
    %c0_29 = arith.constant 0 : index
    %c0_30 = arith.constant 0 : index
    %43 = vector.load %arg7[%c0_27, %c1_28, %c0_29, %c0_30] : memref<1x4x8x8xf32, #tpu.memory_space<vmem>>, vector<1x1x8x8xf32>
    %44 = vector.shape_cast %43 : vector<1x1x8x8xf32> to vector<8x8xf32>
    %45 = vector.shape_cast %42 : vector<8x8xf32> to vector<1x1x8x8xf32>
    tpu.vector_store %arg7[%c0_27, %c1_28, %c0_29, %c0_30], %45 {strides = array<i32>} : memref<1x4x8x8xf32, #tpu.memory_space<vmem>>, vector<1x1x8x8xf32>,
    %c2 = arith.constant 2 : index
    %c0_31 = arith.constant 0 : index
    %c0_32 = arith.constant 0 : index
    %46 = vector.load %arg5[%c2, %c0_31, %c0_32] : memref<4x32x8xf32, #tpu.memory_space<vmem>>, vector<1x32x8xf32>
    %47 = vector.shape_cast %46 : vector<1x32x8xf32> to vector<32x8xf32>
    %cst_33 = arith.constant dense<0.000000e+00> : vector<8x8xf32>
    %48 = tpu.matmul %27, %47, %cst_33 {dimension_numbers = #tpu.dot_dimension_numbers<[1], [0], [0], [1], [0, 0, 1, 1], [], []>} : vector<8x32xf32>, vector<32x8xf32>, vector<8x8xf32> -> vector<8x8xf32>
    %c0_34 = arith.constant 0 : index
    %c2_35 = arith.constant 2 : index
    %c0_36 = arith.constant 0 : index
    %c0_37 = arith.constant 0 : index
    %49 = vector.load %arg7[%c0_34, %c2_35, %c0_36, %c0_37] : memref<1x4x8x8xf32, #tpu.memory_space<vmem>>, vector<1x1x8x8xf32>
    %50 = vector.shape_cast %49 : vector<1x1x8x8xf32> to vector<8x8xf32>
    %51 = vector.shape_cast %48 : vector<8x8xf32> to vector<1x1x8x8xf32>
    tpu.vector_store %arg7[%c0_34, %c2_35, %c0_36, %c0_37], %51 {strides = array<i32>} : memref<1x4x8x8xf32, #tpu.memory_space<vmem>>, vector<1x1x8x8xf32>,
    %c3 = arith.constant 3 : index
    %c0_38 = arith.constant 0 : index
    %c0_39 = arith.constant 0 : index
    %52 = vector.load %arg5[%c3, %c0_38, %c0_39] : memref<4x32x8xf32, #tpu.memory_space<vmem>>, vector<1x32x8xf32>
    %53 = vector.shape_cast %52 : vector<1x32x8xf32> to vector<32x8xf32>
    %cst_40 = arith.constant dense<0.000000e+00> : vector<8x8xf32>
    %54 = tpu.matmul %27, %53, %cst_40 {dimension_numbers = #tpu.dot_dimension_numbers<[1], [0], [0], [1], [0, 0, 1, 1], [], []>} : vector<8x32xf32>, vector<32x8xf32>, vector<8x8xf32> -> vector<8x8xf32>
    %c0_41 = arith.constant 0 : index
    %c3_42 = arith.constant 3 : index
    %c0_43 = arith.constant 0 : index
    %c0_44 = arith.constant 0 : index
    %55 = vector.load %arg7[%c0_41, %c3_42, %c0_43, %c0_44] : memref<1x4x8x8xf32, #tpu.memory_space<vmem>>, vector<1x1x8x8xf32>
    %56 = vector.shape_cast %55 : vector<1x1x8x8xf32> to vector<8x8xf32>
    %57 = vector.shape_cast %54 : vector<8x8xf32> to vector<1x1x8x8xf32>
    tpu.vector_store %arg7[%c0_41, %c3_42, %c0_43, %c0_44], %57 {strides = array<i32>} : memref<1x4x8x8xf32, #tpu.memory_space<vmem>>, vector<1x1x8x8xf32>,
    return
  }
  func.func @transform_0(%arg0: i32, %arg1: i32) -> (i32, i32, i32) {
    %c0_i32 = arith.constant 0 : i32
    %c0_i32_0 = arith.constant 0 : i32
    return %arg0, %arg1, %c0_i32 : i32, i32, i32
  }
  func.func @transform_1(%arg0: i32, %arg1: i32) -> (i32, i32) {
    %c0_i32 = arith.constant 0 : i32
    %c0_i32_0 = arith.constant 0 : i32
    %c0_i32_1 = arith.constant 0 : i32
    return %c0_i32, %c0_i32_0 : i32, i32
  }
  func.func @transform_2(%arg0: i32, %arg1: i32) -> (i32, i32) {
    %c0_i32 = arith.constant 0 : i32
    %c0_i32_0 = arith.constant 0 : i32
    %c0_i32_1 = arith.constant 0 : i32
    return %c0_i32, %c0_i32_0 : i32, i32
  }
  func.func @transform_3(%arg0: i32, %arg1: i32) -> (i32, i32, i32) {
    %c0_i32 = arith.constant 0 : i32
    %c0_i32_0 = arith.constant 0 : i32
    %c0_i32_1 = arith.constant 0 : i32
    %c0_i32_2 = arith.constant 0 : i32
    return %c0_i32, %c0_i32_0, %c0_i32_1 : i32, i32, i32
  }
  func.func @transform_4(%arg0: i32, %arg1: i32) -> (i32, i32) {
    %c0_i32 = arith.constant 0 : i32
    %c0_i32_0 = arith.constant 0 : i32
    %c0_i32_1 = arith.constant 0 : i32
    return %c0_i32, %c0_i32_0 : i32, i32
  }
  func.func @transform_5(%arg0: i32, %arg1: i32) -> (i32, i32, i32, i32) {
    %c0_i32 = arith.constant 0 : i32
    %c0_i32_0 = arith.constant 0 : i32
    %c0_i32_1 = arith.constant 0 : i32
    return %arg0, %c0_i32, %arg1, %c0_i32_0 : i32, i32, i32, i32
  }
  func.func @transform_6(%arg0: i32, %arg1: i32) -> (i32, i32, i32) {
    %c0_i32 = arith.constant 0 : i32
    %c0_i32_0 = arith.constant 0 : i32
    return %arg0, %arg1, %c0_i32 : i32, i32, i32
  }
}

</mosaic_0001>

<llo_original>
// kernel: tpu_custom_call.1
$region0: #{tpu_custom_call.1}
  #allocation0 [shape = 'u32[]', space=smem, size = 0x4, offset = 0x4, fixed_abs, tag = 'smem constant byte address 0x4 - core index']
  #allocation1 [shape = 'u32[144,128]{1,0:T(1,128)}', space=vmem, size = 0x12000, scoped, tag = 'internal scratch']
  %s0 = inlined_call_operand.vmem [shape: f32[2,8,32], index: 0, kind: input, shape index: {}]
  %s1 = inlined_call_operand.vmem [shape: f32[1,32], index: 1, kind: input, shape index: {}]
  %s2 = inlined_call_operand.vmem [shape: f32[1,32], index: 2, kind: input, shape index: {}]
  %s3 = inlined_call_operand.vmem [shape: f32[4,32,8], index: 3, kind: input, shape index: {}]
  %s4 = inlined_call_operand.vmem [shape: f32[32,32], index: 4, kind: input, shape index: {}]
  %s5 = inlined_call_operand.hbm [shape: f32[2,4,8,8], index: 5, kind: output, shape index: {0}]
  %s6 = inlined_call_operand.hbm [shape: bf16[2,8,32], index: 6, kind: output, shape index: {1}]
  %7 = xla_tuple %s5, %s6
  %s8 = sld [smem:[#allocation0]]
  $region61: #{tpu_custom_call.1} parent=0
    _
  %s10 = ssub.s32 1, %s8
  %s11 = scalar_select 0, %s10, %s8
  $region1: #{tpu_custom_call.1} parent=0
    #allocation2 [shape = 'u8[32768]{0}', space=vmem, size = 0x8000, scoped, tag = 'output window, operand 0']
    #allocation3 [shape = 's32[2]{0}', space=sflag, size = 0x8, scoped, tag = 'scoped memory for tpu_custom_call.1']
    #allocation4 [shape = 'u8[4096]{0}', space=vmem, size = 0x1000, scoped, tag = 'output window, operand 1']
    #allocation5 [shape = 's32[2]{0}', space=sflag, size = 0x8, scoped, tag = 'scoped memory for tpu_custom_call.1']
    %12 = vsyncpa [#allocation3], 0
    %s13 = scalar_lea.sflag [#allocation3], 1
    %14 = vsyncpa %s13, 0
    %15 = vsyncpa [#allocation5], 0
    %s16 = scalar_lea.sflag [#allocation5], 1
    %17 = vsyncpa %s16, 0
    loop: start=0, step=1, limit=4
    $region2: #{tpu_custom_call.1} parent=1 // loop_pre_header
      _
    $region3: #{tpu_custom_call.1} parent=1 // loop_header
      %s19 = sphi 0, %s23
      %p20 = scmp.ge.s32.totalorder %s19, 4
      %s26 = sphi 0, %s38
      %s27 = sphi 0, %s34
      %s28 = sphi 0, %s26
      %s29 = sphi 0, %s27
      %s30 = sphi 0, %s28
      %s31 = sphi 0, %s29
      %s43 = sphi 0, %s45
      %s46 = sphi 0, %s43
      %s47 = sphi 0, %s46
      %s63 = sphi 0, %s47
      %s67 = sphi 0, %s67
      %s69 = sphi 0, %s67
      %s70 = sphi 0, %s69
      %s84 = sphi 0, %s70
      %s88 = sphi 0, %s88
      %s90 = sphi 0, %s88
      %s91 = sphi 0, %s90
      %s105 = sphi 0, %s91
      %s109 = sphi 0, %s109
      %s111 = sphi 0, %s109
      %s112 = sphi 0, %s111
      %s126 = sphi 0, %s112
      %s130 = sphi 0, %s130
      %s132 = sphi 0, %s130
      %s133 = sphi 0, %s132
      %s147 = sphi 0, %s133
      %s155 = sphi 0, %s157
      %s158 = sphi 0, %s155
      %s159 = sphi 0, %s158
      %s175 = sphi 0, %s159
      %s183 = sphi 0, %s185
      %s186 = sphi 0, %s183
      %s187 = sphi 0, %s186
      %s203 = sphi 0, %s187
    $region4: #{tpu_custom_call.1} parent=1 // loop_header_branch
      %22 = sbr.rel (%p20) target = $region8
    $region5: #{tpu_custom_call.1} parent=1 // loop_body
      %s24 = ssub.s32 %s19, 1
      %s25 = ssub.s32 %s19, 2
      %s32 = sadd.s32 1, %s27
      %p33 = scmp.ge.s32.totalorder %s32, 1
      %s34 = scalar_select %p33, 0, %s32
      %s35 = sadd.s32 1, %s26
      %s36 = scalar_select %p33, %s35, %s26
      %p37 = scmp.ge.s32.totalorder %s36, 2
      %s38 = scalar_select %p37, 0, %s36
      %s39 = ssub.s32 %s26, %s38
      %s40 = ssub.s32 %s27, %s34
      %s41 = sor.u32 %s39, %s40
      %p42 = scmp.eq.s32.totalorder %s41, 0
      %s44 = sadd.s32 %s43, 1
      %s45 = scalar_select %p42, %s43, %s44
      %p48 = pneg %p42
      %p49 = scmp.eq.s32.totalorder %s19, 1
      %p50 = por %p48, %p49
      %p51 = scmp.ne.s32.totalorder %s43, %s46
      %p52 = scmp.eq.s32.totalorder %s19, 0
      %p53 = por %p51, %p52
      %p54 = scmp.ne.s32.totalorder %s43, %s46
      %p55 = scmp.eq.s32.totalorder %s24, 1
      %p56 = por %p54, %p55
      %p57 = scmp.ne.s32.totalorder %s46, %s47
      %p58 = scmp.eq.s32.totalorder %s24, 0
      %p59 = por %p57, %p58
      %p60 = scmp.ne.s32.totalorder %s46, %s47
      %p61 = scmp.eq.s32.totalorder %s25, 1
      %p62 = por %p60, %p61
      %p64 = scmp.ne.s32.totalorder %s47, %s63
      %p65 = scmp.eq.s32.totalorder %s25, 0
      %p66 = por %p64, %p65
      %s68 = sadd.s32 %s67, 1
      %p71 = scmp.eq.s32.totalorder %s19, 1
      %p72 = scmp.ne.s32.totalorder %s67, %s69
      %p73 = scmp.eq.s32.totalorder %s19, 0
      %p74 = por %p72, %p73
      %p75 = scmp.ne.s32.totalorder %s67, %s69
      %p76 = scmp.eq.s32.totalorder %s24, 1
      %p77 = por %p75, %p76
      %p78 = scmp.ne.s32.totalorder %s69, %s70
      %p79 = scmp.eq.s32.totalorder %s24, 0
      %p80 = por %p78, %p79
      %p81 = scmp.ne.s32.totalorder %s69, %s70
      %p82 = scmp.eq.s32.totalorder %s25, 1
      %p83 = por %p81, %p82
      %p85 = scmp.ne.s32.totalorder %s70, %s84
      %p86 = scmp.eq.s32.totalorder %s25, 0
      %p87 = por %p85, %p86
      %s89 = sadd.s32 %s88, 1
      %p92 = scmp.eq.s32.totalorder %s19, 1
      %p93 = scmp.ne.s32.totalorder %s88, %s90
      %p94 = scmp.eq.s32.totalorder %s19, 0
      %p95 = por %p93, %p94
      %p96 = scmp.ne.s32.totalorder %s88, %s90
      %p97 = scmp.eq.s32.totalorder %s24, 1
      %p98 = por %p96, %p97
      %p99 = scmp.ne.s32.totalorder %s90, %s91
      %p100 = scmp.eq.s32.totalorder %s24, 0
      %p101 = por %p99, %p100
      %p102 = scmp.ne.s32.totalorder %s90, %s91
      %p103 = scmp.eq.s32.totalorder %s25, 1
      %p104 = por %p102, %p103
      %p106 = scmp.ne.s32.totalorder %s91, %s105
      %p107 = scmp.eq.s32.totalorder %s25, 0
      %p108 = por %p106, %p107
      %s110 = sadd.s32 %s109, 1
      %p113 = scmp.eq.s32.totalorder %s19, 1
      %p114 = scmp.ne.s32.totalorder %s109, %s111
      %p115 = scmp.eq.s32.totalorder %s19, 0
      %p116 = por %p114, %p115
      %p117 = scmp.ne.s32.totalorder %s109, %s111
      %p118 = scmp.eq.s32.totalorder %s24, 1
      %p119 = por %p117, %p118
      %p120 = scmp.ne.s32.totalorder %s111, %s112
      %p121 = scmp.eq.s32.totalorder %s24, 0
      %p122 = por %p120, %p121
      %p123 = scmp.ne.s32.totalorder %s111, %s112
      %p124 = scmp.eq.s32.totalorder %s25, 1
      %p125 = por %p123, %p124
      %p127 = scmp.ne.s32.totalorder %s112, %s126
      %p128 = scmp.eq.s32.totalorder %s25, 0
      %p129 = por %p127, %p128
      %s131 = sadd.s32 %s130, 1
      %p134 = scmp.eq.s32.totalorder %s19, 1
      %p135 = scmp.ne.s32.totalorder %s130, %s132
      %p136 = scmp.eq.s32.totalorder %s19, 0
      %p137 = por %p135, %p136
      %p138 = scmp.ne.s32.totalorder %s130, %s132
      %p139 = scmp.eq.s32.totalorder %s24, 1
      %p140 = por %p138, %p139
      %p141 = scmp.ne.s32.totalorder %s132, %s133
      %p142 = scmp.eq.s32.totalorder %s24, 0
      %p143 = por %p141, %p142
      %p144 = scmp.ne.s32.totalorder %s132, %s133
      %p145 = scmp.eq.s32.totalorder %s25, 1
      %p146 = por %p144, %p145
      %p148 = scmp.ne.s32.totalorder %s133, %s147
      %p149 = scmp.eq.s32.totalorder %s25, 0
      %p150 = por %p148, %p149
      %s151 = ssub.s32 %s26, %s38
      %s152 = ssub.s32 %s27, %s34
      %s153 = sor.u32 %s151, %s152
      %p154 = scmp.eq.s32.totalorder %s153, 0
      %s156 = sadd.s32 %s155, 1
      %s157 = scalar_select %p154, %s155, %s156
      %p160 = pneg %p154
      %p161 = scmp.eq.s32.totalorder %s19, 1
      %p162 = por %p160, %p161
      %p163 = scmp.ne.s32.totalorder %s155, %s158
      %p164 = scmp.eq.s32.totalorder %s19, 0
      %p165 = por %p163, %p164
      %p166 = scmp.ne.s32.totalorder %s155, %s158
      %p167 = scmp.eq.s32.totalorder %s24, 1
      %p168 = por %p166, %p167
      %p169 = scmp.ne.s32.totalorder %s158, %s159
      %p170 = scmp.eq.s32.totalorder %s24, 0
      %p171 = por %p169, %p170
      %p172 = scmp.ne.s32.totalorder %s158, %s159
      %p173 = scmp.eq.s32.totalorder %s25, 1
      %p174 = por %p172, %p173
      %p176 = scmp.ne.s32.totalorder %s159, %s175
      %p177 = scmp.eq.s32.totalorder %s25, 0
      %p178 = por %p176, %p177
      %s179 = ssub.s32 %s26, %s38
      %s180 = ssub.s32 %s27, %s34
      %s181 = sor.u32 %s179, %s180
      %p182 = scmp.eq.s32.totalorder %s181, 0
      %s184 = sadd.s32 %s183, 1
      %s185 = scalar_select %p182, %s183, %s184
      %p188 = pneg %p182
      %p189 = scmp.eq.s32.totalorder %s19, 1
      %p190 = por %p188, %p189
      %p191 = scmp.ne.s32.totalorder %s183, %s186
      %p192 = scmp.eq.s32.totalorder %s19, 0
      %p193 = por %p191, %p192
      %p194 = scmp.ne.s32.totalorder %s183, %s186
      %p195 = scmp.eq.s32.totalorder %s24, 1
      %p196 = por %p194, %p195
      %p197 = scmp.ne.s32.totalorder %s186, %s187
      %p198 = scmp.eq.s32.totalorder %s24, 0
      %p199 = por %p197, %p198
      %p200 = scmp.ne.s32.totalorder %s186, %s187
      %p201 = scmp.eq.s32.totalorder %s25, 1
      %p202 = por %p200, %p201
      %p204 = scmp.ne.s32.totalorder %s187, %s203
      %p205 = scmp.eq.s32.totalorder %s25, 0
      %p206 = por %p204, %p205
      %p207 = scmp.le.s32.totalorder 1, %s19
      %p208 = scmp.lt.s32.totalorder %s19, 3
      %p209 = pnand %p207, %p208
      %p210 = pneg %p209
      // Predicated region
      $region9: #{tpu_custom_call.1} parent=5 // pred_check
        _
      $region10: #{tpu_custom_call.1} parent=5 // pred_check_branch
        %212 = sbr.rel (%p209) target = $region12
      $region11: #{tpu_custom_call.1} parent=5 // pred_region
        %s213 = ssub.s32 %s19, 1
        // Predicated region
        $region13: #{tpu_custom_call.1} parent=11 // pred_check
          %p214 = pneg %p80
        $region14: #{tpu_custom_call.1} parent=11 // pred_check_branch
          %216 = sbr.rel (%p214) target = $region16
        $region15: #{tpu_custom_call.1} parent=11 // pred_region
          _
        $region16: #{tpu_custom_call.1} parent=11 // pred_fallthru
          _
        // Predicated region
        $region17: #{tpu_custom_call.1} parent=11 // pred_check
          %p217 = pneg %p101
        $region18: #{tpu_custom_call.1} parent=11 // pred_check_branch
          %219 = sbr.rel (%p217) target = $region20
        $region19: #{tpu_custom_call.1} parent=11 // pred_region
          _
        $region20: #{tpu_custom_call.1} parent=11 // pred_fallthru
          _
        // Predicated region
        $region21: #{tpu_custom_call.1} parent=11 // pred_check
          %p220 = pneg %p122
        $region22: #{tpu_custom_call.1} parent=11 // pred_check_branch
          %222 = sbr.rel (%p220) target = $region24
        $region23: #{tpu_custom_call.1} parent=11 // pred_region
          _
        $region24: #{tpu_custom_call.1} parent=11 // pred_fallthru
          _
        // Predicated region
        $region25: #{tpu_custom_call.1} parent=11 // pred_check
          %p223 = pneg %p143
        $region26: #{tpu_custom_call.1} parent=11 // pred_check_branch
          %225 = sbr.rel (%p223) target = $region28
        $region27: #{tpu_custom_call.1} parent=11 // pred_region
          _
        $region28: #{tpu_custom_call.1} parent=11 // pred_fallthru
          _
      $region12: #{tpu_custom_call.1} parent=5 // pred_fallthru
        _
      %p226 = scmp.lt.s32.totalorder %s19, 2
      // Predicated region
      $region29: #{tpu_custom_call.1} parent=5 // pred_check
        %p227 = pneg %p226
      $region30: #{tpu_custom_call.1} parent=5 // pred_check_branch
        %229 = sbr.rel (%p227) target = $region32
      $region31: #{tpu_custom_call.1} parent=5 // pred_region
        // Predicated region
        $region33: #{tpu_custom_call.1} parent=31 // pred_check
          %p230 = pneg %p53
        $region34: #{tpu_custom_call.1} parent=31 // pred_check_branch
          %232 = sbr.rel (%p230) target = $region36
        $region35: #{tpu_custom_call.1} parent=31 // pred_region
          %p233 = scmp.lt.s32.totalorder %s26, 1
          %s234 = scalar_select %p233, %s26, 1
          %p235 = scmp.lt.s32.totalorder %s27, 0
          %s236 = scalar_select %p235, %s27, 0
          %s237 = sadd.s32 %s236, %s234
          %s238 = smul.addr %s237, 8
          %s239 = scalar_lea.vmem %s0, %s238
        $region36: #{tpu_custom_call.1} parent=31 // pred_fallthru
          _
      $region32: #{tpu_custom_call.1} parent=5 // pred_fallthru
        _
      %p240 = scmp.le.s32.totalorder 1, %s19
      %p241 = scmp.lt.s32.totalorder %s19, 3
      %p242 = pnand %p240, %p241
      %p243 = pneg %p242
      // Predicated region
      $region37: #{tpu_custom_call.1} parent=5 // pred_check
        _
      $region38: #{tpu_custom_call.1} parent=5 // pred_check_branch
        %245 = sbr.rel (%p242) target = $region40
      $region39: #{tpu_custom_call.1} parent=5 // pred_region
        %s246 = ssub.s32 %s19, 1
        %p247 = scmp.lt.s32.totalorder %s28, 1
        %s248 = scalar_select %p247, %s28, 1
        %p249 = scmp.lt.s32.totalorder %s29, 0
        %s250 = scalar_select %p249, %s29, 0
        %s251 = sadd.s32 %s250, %s248
        %s252 = smul.addr %s251, 8
        %s253 = scalar_lea.vmem %s0, %s252
        %p254 = pneg %p59
        %p255 = pneg %p56
        %p256 = pneg %p80
        %p257 = pneg %p77
        %p258 = pneg %p101
        %p259 = pneg %p98
        %p260 = pneg %p122
        %p261 = pneg %p119
        %p262 = pneg %p143
        %p263 = pneg %p140
        %p264 = pneg %p171
        %p265 = pneg %p168
        %s266 = sand.u32 %s158, 1
        %s267 = scalar_lea.sflag [#allocation3], %s266
        %s268 = sand.u32 %s158, 1
        %s269 = smul.addr %s268, 32
        %s270 = scalar_lea.vmem [#allocation2], %s269
        %p271 = pneg %p199
        %p272 = pneg %p196
        %s273 = sand.u32 %s186, 1
        %s274 = scalar_lea.sflag [#allocation5], %s273
        %s275 = sand.u32 %s186, 1
        %s276 = smul.addr %s275, 4
        %s277 = scalar_lea.vmem [#allocation4], %s276
        %p278 = scmp.lt.s32.totalorder %s28, 1
        %s279 = scalar_select %p278, %s28, 1
        %p280 = scmp.lt.s32.totalorder %s29, 0
        %s281 = scalar_select %p280, %s29, 0
        %s282 = sadd.s32 %s281, %s279
        %s283 = smul.addr %s282, 8
        %s284 = scalar_lea.vmem %s0, %s283
        %v285 = vld [vmem:[%s284] sm:$0xff]
        %vm286 = vcmask 261120
        %v287 = vsel %vm286, %v285, 0.0
        %288 = vadd.xlane.f32.xlu0 %v287
        %v289 = vpop.xlane.xlu0 %288
        %v290 = vrcp.pop 32.0
        %v291 = vmul.f32 %v289, %v290
        %v292 = vsub.f32 %v285, %v291
        %v293 = vmul.f32 %v292, %v292
        %v294 = vsel %vm286, %v293, 0.0
        %295 = vadd.xlane.f32.xlu0 %v294
        %v296 = vpop.xlane.xlu0 %295
        %v297 = vmul.f32 %v296, %v290
        %v298 = vadd.f32 %v297, 1e-05
        %v299 = vrsqrt.pop %v298
        %v300 = vmul.f32 %v292, %v299
        %v301 = vld [vmem:[%s1] sm:$0x1]
        %v303 = vlaneseq
        %v304 = vshrl.u32 %v303, 7
        %v305 = vsub.s32 0, %v304
        %v306 = vrot.slane %v301, %v305
        %v308 = vmul.f32 %v300, %v306
        %v309 = vld [vmem:[%s2] sm:$0x1]
        %v311 = vlaneseq
        %v312 = vshrl.u32 %v311, 7
        %v313 = vsub.s32 0, %v312
        %v314 = vrot.slane %v309, %v313
        %v316 = vadd.f32 %v308, %v314
        %v317 = vld [vmem:[%s4] sm:$0xff]
        %v318 = vld [vmem:[%s4 + $0x8] sm:$0xff]
        %v319 = vld [vmem:[%s4 + $0x10] sm:$0xff]
        %v320 = vld [vmem:[%s4 + $0x18] sm:$0xff]
        %v322 = vsel %vm286, %v316, 0
        %324 = vmatprep.subr.mxu0 0.0
        %325 = vmatpush1.msra.mxu0 %v317
        %326 = vmatprep.subr.mxu0 0.0
        %327 = vmatpush1.msra.mxu0 %v318
        %328 = vmatprep.subr.mxu0 0.0
        %329 = vmatpush1.msra.mxu0 %v319
        %330 = vmatprep.subr.mxu0 0.0
        %331 = vmatpush1.msra.mxu0 %v320
        %332 = vmatprep.subr.mxu0 0.0
        %333 = vmatpush1.msra.mxu0 0.0
        %334 = vmatprep.subr.mxu0 0.0
        %335 = vmatpush1.msra.mxu0 0.0
        %336 = vmatprep.subr.mxu0 0.0
        %337 = vmatpush1.msra.mxu0 0.0
        %338 = vmatprep.subr.mxu0 0.0
        %339 = vmatpush1.msra.mxu0 0.0
        %340 = vmatprep.subr.mxu0 0.0
        %341 = vmatpush1.msra.mxu0 0.0
        %342 = vmatprep.subr.mxu0 0.0
        %343 = vmatpush1.msra.mxu0 0.0
        %344 = vmatprep.subr.mxu0 0.0
        %345 = vmatpush1.msra.mxu0 0.0
        %346 = vmatprep.subr.mxu0 0.0
        %347 = vmatpush1.msra.mxu0 0.0
        %348 = vmatprep.subr.mxu0 0.0
        %349 = vmatpush1.msra.mxu0 0.0
        %350 = vmatprep.subr.mxu0 0.0
        %351 = vmatpush1.msra.mxu0 0.0
        %352 = vmatprep.subr.mxu0 0.0
        %353 = vmatpush1.msra.mxu0 0.0
        %354 = vmatprep.subr.mxu0 0.0
        %355 = vmatpush1.msra.mxu0 0.0
        %356 = vmatprep.subr.mxu0 0.0
        %357 = vmatpush1.msra.mxu0 0.0
        %358 = vmatprep.subr.mxu0 0.0
        %359 = vmatpush1.msra.mxu0 0.0
        %360 = vmatprep.subr.mxu0 0.0
        %361 = vmatpush1.msra.mxu0 0.0
        %362 = vmatprep.subr.mxu0 0.0
        %363 = vmatpush1.msra.mxu0 0.0
        %364 = vmatprep.subr.mxu0 0.0
        %365 = vmatpush1.msra.mxu0 0.0
        %366 = vmatprep.subr.mxu0 0.0
        %367 = vmatpush1.msra.mxu0 0.0
        %368 = vmatprep.subr.mxu0 0.0
        %369 = vmatpush1.msra.mxu0 0.0
        %370 = vmatprep.subr.mxu0 0.0
        %371 = vmatpush1.msra.mxu0 0.0
        %372 = vmatprep.subr.mxu0 0.0
        %373 = vmatpush1.msra.mxu0 0.0
        %374 = vmatprep.subr.mxu0 0.0
        %375 = vmatpush1.msra.mxu0 0.0
        %376 = vmatprep.subr.mxu0 0.0
        %377 = vmatpush1.msra.mxu0 0.0
        %378 = vmatprep.subr.mxu0 0.0
        %379 = vmatpush1.msra.mxu0 0.0
        %380 = vmatprep.subr.mxu0 0.0
        %381 = vmatpush1.msra.mxu0 0.0
        %382 = vmatprep.subr.mxu0 0.0
        %383 = vmatpush1.msra.mxu0 0.0
        %384 = vmatprep.subr.mxu0 0.0
        %385 = vmatpush1.msra.mxu0 0.0
        %386 = vmatprep.subr.mxu0 0.0
        %387 = vmatpush1.msra.mxu0 0.0
        %388 = vmatprep.mubr.f32.mxu0 0.0
        %389 = vmatmul.mubr.f32.gmra.mrb[0].mxu0 %v322
        %v390 = vpop.f32.mrb[0].mxu0
        %v391 = vadd.f32 0.0, %v390
        %v392 = vpop.f32.mrb[0].mxu0
        %393 = vdwg.mxu0
        %v394 = vpack.c.bf16 %v391, %v391
        %vm395 = vcmask 257024
        %396 = vst.msk [vmem:[%s277] sm:$0xf] %vm395, %v394
        %v397 = vld [vmem:[%s3] sm:$0xff]
        %v398 = vld [vmem:[%s3 + $0x8] sm:$0xff]
        %v399 = vld [vmem:[%s3 + $0x10] sm:$0xff]
        %v400 = vld [vmem:[%s3 + $0x18] sm:$0xff]
        %401 = vmatprep.subr.mxu0 0.0
        %402 = vmatpush1.msra.mxu0 %v397
        %403 = vmatprep.subr.mxu0 0.0
        %404 = vmatpush1.msra.mxu0 %v398
        %405 = vmatprep.subr.mxu0 0.0
        %406 = vmatpush1.msra.mxu0 %v399
        %407 = vmatprep.subr.mxu0 0.0
        %408 = vmatpush1.msra.mxu0 %v400
        %409 = vmatprep.subr.mxu0 0.0
        %410 = vmatpush1.msra.mxu0 0.0
        %411 = vmatprep.subr.mxu0 0.0
        %412 = vmatpush1.msra.mxu0 0.0
        %413 = vmatprep.subr.mxu0 0.0
        %414 = vmatpush1.msra.mxu0 0.0
        %415 = vmatprep.subr.mxu0 0.0
        %416 = vmatpush1.msra.mxu0 0.0
        %417 = vmatprep.subr.mxu0 0.0
        %418 = vmatpush1.msra.mxu0 0.0
        %419 = vmatprep.subr.mxu0 0.0
        %420 = vmatpush1.msra.mxu0 0.0
        %421 = vmatprep.subr.mxu0 0.0
        %422 = vmatpush1.msra.mxu0 0.0
        %423 = vmatprep.subr.mxu0 0.0
        %424 = vmatpush1.msra.mxu0 0.0
        %425 = vmatprep.subr.mxu0 0.0
        %426 = vmatpush1.msra.mxu0 0.0
        %427 = vmatprep.subr.mxu0 0.0
        %428 = vmatpush1.msra.mxu0 0.0
        %429 = vmatprep.subr.mxu0 0.0
        %430 = vmatpush1.msra.mxu0 0.0
        %431 = vmatprep.subr.mxu0 0.0
        %432 = vmatpush1.msra.mxu0 0.0
        %433 = vmatprep.subr.mxu0 0.0
        %434 = vmatpush1.msra.mxu0 0.0
        %435 = vmatprep.subr.mxu0 0.0
        %436 = vmatpush1.msra.mxu0 0.0
        %437 = vmatprep.subr.mxu0 0.0
        %438 = vmatpush1.msra.mxu0 0.0
        %439 = vmatprep.subr.mxu0 0.0
        %440 = vmatpush1.msra.mxu0 0.0
        %441 = vmatprep.subr.mxu0 0.0
        %442 = vmatpush1.msra.mxu0 0.0
        %443 = vmatprep.subr.mxu0 0.0
        %444 = vmatpush1.msra.mxu0 0.0
        %445 = vmatprep.subr.mxu0 0.0
        %446 = vmatpush1.msra.mxu0 0.0
        %447 = vmatprep.subr.mxu0 0.0
        %448 = vmatpush1.msra.mxu0 0.0
        %449 = vmatprep.subr.mxu0 0.0
        %450 = vmatpush1.msra.mxu0 0.0
        %451 = vmatprep.subr.mxu0 0.0
        %452 = vmatpush1.msra.mxu0 0.0
        %453 = vmatprep.subr.mxu0 0.0
        %454 = vmatpush1.msra.mxu0 0.0
        %455 = vmatprep.subr.mxu0 0.0
        %456 = vmatpush1.msra.mxu0 0.0
        %457 = vmatprep.subr.mxu0 0.0
        %458 = vmatpush1.msra.mxu0 0.0
        %459 = vmatprep.subr.mxu0 0.0
        %460 = vmatpush1.msra.mxu0 0.0
        %461 = vmatprep.subr.mxu0 0.0
        %462 = vmatpush1.msra.mxu0 0.0
        %463 = vmatprep.subr.mxu0 0.0
        %464 = vmatpush1.msra.mxu0 0.0
        %465 = vmatprep.mubr.f32.mxu0 0.0
        %466 = vmatmul.mubr.f32.gmra.mrb[0].mxu0 %v322
        %v467 = vpop.f32.mrb[0].mxu0
        %v468 = vadd.f32 0.0, %v467
        %v469 = vpop.f32.mrb[0].mxu0
        %470 = vdwg.mxu0
        %vm471 = vcmask 64512
        %472 = vst.msk [vmem:[%s270] sm:$0xff] %vm471, %v468
        %s473 = scalar_lea.vmem %s3, 32
        %v474 = vld [vmem:[%s473] sm:$0xff]
        %v475 = vld [vmem:[%s473 + $0x8] sm:$0xff]
        %v476 = vld [vmem:[%s473 + $0x10] sm:$0xff]
        %v477 = vld [vmem:[%s473 + $0x18] sm:$0xff]
        %478 = vmatprep.subr.mxu0 0.0
        %479 = vmatpush1.msra.mxu0 %v474
        %480 = vmatprep.subr.mxu0 0.0
        %481 = vmatpush1.msra.mxu0 %v475
        %482 = vmatprep.subr.mxu0 0.0
        %483 = vmatpush1.msra.mxu0 %v476
        %484 = vmatprep.subr.mxu0 0.0
        %485 = vmatpush1.msra.mxu0 %v477
        %486 = vmatprep.subr.mxu0 0.0
        %487 = vmatpush1.msra.mxu0 0.0
        %488 = vmatprep.subr.mxu0 0.0
        %489 = vmatpush1.msra.mxu0 0.0
        %490 = vmatprep.subr.mxu0 0.0
        %491 = vmatpush1.msra.mxu0 0.0
        %492 = vmatprep.subr.mxu0 0.0
        %493 = vmatpush1.msra.mxu0 0.0
        %494 = vmatprep.subr.mxu0 0.0
        %495 = vmatpush1.msra.mxu0 0.0
        %496 = vmatprep.subr.mxu0 0.0
        %497 = vmatpush1.msra.mxu0 0.0
        %498 = vmatprep.subr.mxu0 0.0
        %499 = vmatpush1.msra.mxu0 0.0
        %500 = vmatprep.subr.mxu0 0.0
        %501 = vmatpush1.msra.mxu0 0.0
        %502 = vmatprep.subr.mxu0 0.0
        %503 = vmatpush1.msra.mxu0 0.0
        %504 = vmatprep.subr.mxu0 0.0
        %505 = vmatpush1.msra.mxu0 0.0
        %506 = vmatprep.subr.mxu0 0.0
        %507 = vmatpush1.msra.mxu0 0.0
        %508 = vmatprep.subr.mxu0 0.0
        %509 = vmatpush1.msra.mxu0 0.0
        %510 = vmatprep.subr.mxu0 0.0
        %511 = vmatpush1.msra.mxu0 0.0
        %512 = vmatprep.subr.mxu0 0.0
        %513 = vmatpush1.msra.mxu0 0.0
        %514 = vmatprep.subr.mxu0 0.0
        %515 = vmatpush1.msra.mxu0 0.0
        %516 = vmatprep.subr.mxu0 0.0
        %517 = vmatpush1.msra.mxu0 0.0
        %518 = vmatprep.subr.mxu0 0.0
        %519 = vmatpush1.msra.mxu0 0.0
        %520 = vmatprep.subr.mxu0 0.0
        %521 = vmatpush1.msra.mxu0 0.0
        %522 = vmatprep.subr.mxu0 0.0
        %523 = vmatpush1.msra.mxu0 0.0
        %524 = vmatprep.subr.mxu0 0.0
        %525 = vmatpush1.msra.mxu0 0.0
        %526 = vmatprep.subr.mxu0 0.0
        %527 = vmatpush1.msra.mxu0 0.0
        %528 = vmatprep.subr.mxu0 0.0
        %529 = vmatpush1.msra.mxu0 0.0
        %530 = vmatprep.subr.mxu0 0.0
        %531 = vmatpush1.msra.mxu0 0.0
        %532 = vmatprep.subr.mxu0 0.0
        %533 = vmatpush1.msra.mxu0 0.0
        %534 = vmatprep.subr.mxu0 0.0
        %535 = vmatpush1.msra.mxu0 0.0
        %536 = vmatprep.subr.mxu0 0.0
        %537 = vmatpush1.msra.mxu0 0.0
        %538 = vmatprep.subr.mxu0 0.0
        %539 = vmatpush1.msra.mxu0 0.0
        %540 = vmatprep.subr.mxu0 0.0
        %541 = vmatpush1.msra.mxu0 0.0
        %542 = vmatprep.mubr.f32.mxu0 0.0
        %543 = vmatmul.mubr.f32.gmra.mrb[0].mxu0 %v322
        %v544 = vpop.f32.mrb[0].mxu0
        %v545 = vadd.f32 0.0, %v544
        %v546 = vpop.f32.mrb[0].mxu0
        %547 = vdwg.mxu0
        %s548 = scalar_lea.vmem %s270, 8 [#allocation2]
        %549 = vst.msk [vmem:[%s548] sm:$0xff] %vm471, %v545
        %s550 = scalar_lea.vmem %s3, 64
        %v551 = vld [vmem:[%s550] sm:$0xff]
        %v552 = vld [vmem:[%s550 + $0x8] sm:$0xff]
        %v553 = vld [vmem:[%s550 + $0x10] sm:$0xff]
        %v554 = vld [vmem:[%s550 + $0x18] sm:$0xff]
        %555 = vmatprep.subr.mxu0 0.0
        %556 = vmatpush1.msra.mxu0 %v551
        %557 = vmatprep.subr.mxu0 0.0
        %558 = vmatpush1.msra.mxu0 %v552
        %559 = vmatprep.subr.mxu0 0.0
        %560 = vmatpush1.msra.mxu0 %v553
        %561 = vmatprep.subr.mxu0 0.0
        %562 = vmatpush1.msra.mxu0 %v554
        %563 = vmatprep.subr.mxu0 0.0
        %564 = vmatpush1.msra.mxu0 0.0
        %565 = vmatprep.subr.mxu0 0.0
        %566 = vmatpush1.msra.mxu0 0.0
        %567 = vmatprep.subr.mxu0 0.0
        %568 = vmatpush1.msra.mxu0 0.0
        %569 = vmatprep.subr.mxu0 0.0
        %570 = vmatpush1.msra.mxu0 0.0
        %571 = vmatprep.subr.mxu0 0.0
        %572 = vmatpush1.msra.mxu0 0.0
        %573 = vmatprep.subr.mxu0 0.0
        %574 = vmatpush1.msra.mxu0 0.0
        %575 = vmatprep.subr.mxu0 0.0
        %576 = vmatpush1.msra.mxu0 0.0
        %577 = vmatprep.subr.mxu0 0.0
        %578 = vmatpush1.msra.mxu0 0.0
        %579 = vmatprep.subr.mxu0 0.0
        %580 = vmatpush1.msra.mxu0 0.0
        %581 = vmatprep.subr.mxu0 0.0
        %582 = vmatpush1.msra.mxu0 0.0
        %583 = vmatprep.subr.mxu0 0.0
        %584 = vmatpush1.msra.mxu0 0.0
        %585 = vmatprep.subr.mxu0 0.0
        %586 = vmatpush1.msra.mxu0 0.0
        %587 = vmatprep.subr.mxu0 0.0
        %588 = vmatpush1.msra.mxu0 0.0
        %589 = vmatprep.subr.mxu0 0.0
        %590 = vmatpush1.msra.mxu0 0.0
        %591 = vmatprep.subr.mxu0 0.0
        %592 = vmatpush1.msra.mxu0 0.0
        %593 = vmatprep.subr.mxu0 0.0
        %594 = vmatpush1.msra.mxu0 0.0
        %595 = vmatprep.subr.mxu0 0.0
        %596 = vmatpush1.msra.mxu0 0.0
        %597 = vmatprep.subr.mxu0 0.0
        %598 = vmatpush1.msra.mxu0 0.0
        %599 = vmatprep.subr.mxu0 0.0
        %600 = vmatpush1.msra.mxu0 0.0
        %601 = vmatprep.subr.mxu0 0.0
        %602 = vmatpush1.msra.mxu0 0.0
        %603 = vmatprep.subr.mxu0 0.0
        %604 = vmatpush1.msra.mxu0 0.0
        %605 = vmatprep.subr.mxu0 0.0
        %606 = vmatpush1.msra.mxu0 0.0
        %607 = vmatprep.subr.mxu0 0.0
        %608 = vmatpush1.msra.mxu0 0.0
        %609 = vmatprep.subr.mxu0 0.0
        %610 = vmatpush1.msra.mxu0 0.0
        %611 = vmatprep.subr.mxu0 0.0
        %612 = vmatpush1.msra.mxu0 0.0
        %613 = vmatprep.subr.mxu0 0.0
        %614 = vmatpush1.msra.mxu0 0.0
        %615 = vmatprep.subr.mxu0 0.0
        %616 = vmatpush1.msra.mxu0 0.0
        %617 = vmatprep.subr.mxu0 0.0
        %618 = vmatpush1.msra.mxu0 0.0
        %619 = vmatprep.mubr.f32.mxu0 0.0
        %620 = vmatmul.mubr.f32.gmra.mrb[0].mxu0 %v322
        %v621 = vpop.f32.mrb[0].mxu0
        %v622 = vadd.f32 0.0, %v621
        %v623 = vpop.f32.mrb[0].mxu0
        %624 = vdwg.mxu0
        %s625 = scalar_lea.vmem %s270, 16 [#allocation2]
        %626 = vst.msk [vmem:[%s625] sm:$0xff] %vm471, %v622
        %s627 = scalar_lea.vmem %s3, 96
        %v628 = vld [vmem:[%s627] sm:$0xff]
        %v629 = vld [vmem:[%s627 + $0x8] sm:$0xff]
        %v630 = vld [vmem:[%s627 + $0x10] sm:$0xff]
        %v631 = vld [vmem:[%s627 + $0x18] sm:$0xff]
        %632 = vmatprep.subr.mxu0 0.0
        %633 = vmatpush1.msra.mxu0 %v628
        %634 = vmatprep.subr.mxu0 0.0
        %635 = vmatpush1.msra.mxu0 %v629
        %636 = vmatprep.subr.mxu0 0.0
        %637 = vmatpush1.msra.mxu0 %v630
        %638 = vmatprep.subr.mxu0 0.0
        %639 = vmatpush1.msra.mxu0 %v631
        %640 = vmatprep.subr.mxu0 0.0
        %641 = vmatpush1.msra.mxu0 0.0
        %642 = vmatprep.subr.mxu0 0.0
        %643 = vmatpush1.msra.mxu0 0.0
        %644 = vmatprep.subr.mxu0 0.0
        %645 = vmatpush1.msra.mxu0 0.0
        %646 = vmatprep.subr.mxu0 0.0
        %647 = vmatpush1.msra.mxu0 0.0
        %648 = vmatprep.subr.mxu0 0.0
        %649 = vmatpush1.msra.mxu0 0.0
        %650 = vmatprep.subr.mxu0 0.0
        %651 = vmatpush1.msra.mxu0 0.0
        %652 = vmatprep.subr.mxu0 0.0
        %653 = vmatpush1.msra.mxu0 0.0
        %654 = vmatprep.subr.mxu0 0.0
        %655 = vmatpush1.msra.mxu0 0.0
        %656 = vmatprep.subr.mxu0 0.0
        %657 = vmatpush1.msra.mxu0 0.0
        %658 = vmatprep.subr.mxu0 0.0
        %659 = vmatpush1.msra.mxu0 0.0
        %660 = vmatprep.subr.mxu0 0.0
        %661 = vmatpush1.msra.mxu0 0.0
        %662 = vmatprep.subr.mxu0 0.0
        %663 = vmatpush1.msra.mxu0 0.0
        %664 = vmatprep.subr.mxu0 0.0
        %665 = vmatpush1.msra.mxu0 0.0
        %666 = vmatprep.subr.mxu0 0.0
        %667 = vmatpush1.msra.mxu0 0.0
        %668 = vmatprep.subr.mxu0 0.0
        %669 = vmatpush1.msra.mxu0 0.0
        %670 = vmatprep.subr.mxu0 0.0
        %671 = vmatpush1.msra.mxu0 0.0
        %672 = vmatprep.subr.mxu0 0.0
        %673 = vmatpush1.msra.mxu0 0.0
        %674 = vmatprep.subr.mxu0 0.0
        %675 = vmatpush1.msra.mxu0 0.0
        %676 = vmatprep.subr.mxu0 0.0
        %677 = vmatpush1.msra.mxu0 0.0
        %678 = vmatprep.subr.mxu0 0.0
        %679 = vmatpush1.msra.mxu0 0.0
        %680 = vmatprep.subr.mxu0 0.0
        %681 = vmatpush1.msra.mxu0 0.0
        %682 = vmatprep.subr.mxu0 0.0
        %683 = vmatpush1.msra.mxu0 0.0
        %684 = vmatprep.subr.mxu0 0.0
        %685 = vmatpush1.msra.mxu0 0.0
        %686 = vmatprep.subr.mxu0 0.0
        %687 = vmatpush1.msra.mxu0 0.0
        %688 = vmatprep.subr.mxu0 0.0
        %689 = vmatpush1.msra.mxu0 0.0
        %690 = vmatprep.subr.mxu0 0.0
        %691 = vmatpush1.msra.mxu0 0.0
        %692 = vmatprep.subr.mxu0 0.0
        %693 = vmatpush1.msra.mxu0 0.0
        %694 = vmatprep.subr.mxu0 0.0
        %695 = vmatpush1.msra.mxu0 0.0
        %696 = vmatprep.mubr.f32.mxu0 0.0
        %697 = vmatmul.mubr.f32.gmra.mrb[0].mxu0 %v322
        %v698 = vpop.f32.mrb[0].mxu0
        %v699 = vadd.f32 0.0, %v698
        %v700 = vpop.f32.mrb[0].mxu0
        %701 = vdwg.mxu0
        %s702 = scalar_lea.vmem %s270, 24 [#allocation2]
        %703 = vst.msk [vmem:[%s702] sm:$0xff] %vm471, %v699
        %s704 = sand.u32 %s158, 1
        %s705 = scalar_lea.sflag [#allocation3], %s704
        %s706 = sand.u32 %s158, 1
        %s707 = smul.addr %s706, 32
        %s708 = scalar_lea.vmem [#allocation2], %s707
        %s709 = sand.u32 %s186, 1
        %s710 = scalar_lea.sflag [#allocation5], %s709
        %s711 = sand.u32 %s186, 1
        %s712 = smul.addr %s711, 4
        %s713 = scalar_lea.vmem [#allocation4], %s712
        // Predicated region
        $region41: #{tpu_custom_call.1} parent=39 // pred_check
          %p714 = pneg %p168
        $region42: #{tpu_custom_call.1} parent=39 // pred_check_branch
          %716 = sbr.rel (%p714) target = $region44
        $region43: #{tpu_custom_call.1} parent=39 // pred_region
          %s718 = ssub.s32 512, 512
          %719 = vsyncadd %s705, %s718
          %s720 = smul.addr %s28, 4
          %s721 = sadd.s32 %s29, %s720
          %s722 = smul.addr %s721, 128
          %s723 = scalar_lea.hbm %s5, %s722
          %s724 = sshll.u32 %s708, 4
          %s725 = int_to_ptr.vmem [resolvable:$true] %s724
          %730 = dma.vmem_to_hbm [thread:$0]  %s725, 512, %s723, %s705, 128, 128, 8
        $region44: #{tpu_custom_call.1} parent=39 // pred_fallthru
          _
        // Predicated region
        $region45: #{tpu_custom_call.1} parent=39 // pred_check
          %p731 = pneg %p196
        $region46: #{tpu_custom_call.1} parent=39 // pred_check_branch
          %733 = sbr.rel (%p731) target = $region48
        $region47: #{tpu_custom_call.1} parent=39 // pred_region
          %s735 = ssub.s32 64, 64
          %736 = vsyncadd %s710, %s735
          %s737 = sadd.s32 %s29, %s28
          %s738 = smul.addr %s737, 64
          %s739 = scalar_lea.hbm %s6, %s738
          %s741 = sshll.u32 %s713, 4
          %s742 = int_to_ptr.vmem [resolvable:$true] %s741
          %744 = dma.vmem_to_hbm [thread:$0]  %s742, 64, %s739, %s710
        $region48: #{tpu_custom_call.1} parent=39 // pred_fallthru
          _
      $region40: #{tpu_custom_call.1} parent=5 // pred_fallthru
        _
      %p745 = scmp.le.s32.totalorder 2, %s19
      // Predicated region
      $region49: #{tpu_custom_call.1} parent=5 // pred_check
        %p746 = pneg %p745
      $region50: #{tpu_custom_call.1} parent=5 // pred_check_branch
        %748 = sbr.rel (%p746) target = $region52
      $region51: #{tpu_custom_call.1} parent=5 // pred_region
        %s749 = ssub.s32 %s19, 2
        // Predicated region
        $region53: #{tpu_custom_call.1} parent=51 // pred_check
          %p750 = pneg %p174
        $region54: #{tpu_custom_call.1} parent=51 // pred_check_branch
          %752 = sbr.rel (%p750) target = $region56
        $region55: #{tpu_custom_call.1} parent=51 // pred_region
          %s753 = sand.u32 %s159, 1
          %s754 = scalar_lea.sflag [#allocation3], %s753
          %s755 = sand.u32 %s159, 1
          %s756 = smul.addr %s755, 32
          %s757 = scalar_lea.vmem [#allocation2], %s756
          %758 = dma.done %s754, 512
        $region56: #{tpu_custom_call.1} parent=51 // pred_fallthru
          _
        // Predicated region
        $region57: #{tpu_custom_call.1} parent=51 // pred_check
          %p759 = pneg %p202
        $region58: #{tpu_custom_call.1} parent=51 // pred_check_branch
          %761 = sbr.rel (%p759) target = $region60
        $region59: #{tpu_custom_call.1} parent=51 // pred_region
          %s762 = sand.u32 %s187, 1
          %s763 = scalar_lea.sflag [#allocation5], %s762
          %s764 = sand.u32 %s187, 1
          %s765 = smul.addr %s764, 4
          %s766 = scalar_lea.vmem [#allocation4], %s765
          %767 = dma.done %s763, 64
        $region60: #{tpu_custom_call.1} parent=51 // pred_fallthru
          _
      $region52: #{tpu_custom_call.1} parent=5 // pred_fallthru
        _
    $region6: #{tpu_custom_call.1} parent=1 // loop_footer
      %s23 = sadd.s32 1, %s19
    $region7: #{tpu_custom_call.1} parent=1 // loop_footer_branch
      %18 = sbr.rel target = $region3
    $region8: #{tpu_custom_call.1} parent=1 // loop_exit
      _
    %768 = vsyncpa [#allocation3], 1
    %s769 = scalar_lea.sflag [#allocation3], 1
    %770 = vsyncpa %s769, 1
    %771 = vsyncpa [#allocation5], 1
    %s772 = scalar_lea.sflag [#allocation5], 1
    %773 = vsyncpa %s772, 1

</llo_original>
